<compile_context>
chip_gen: v7x
topology: tpu7x:2x2x1
jax: 0.10.0
libtpu: 0.0.40
codegen_flags: <defaults>
</compile_context>

<pallas_src>
import functools
import math

import jax
import jax.numpy as jnp
import numpy as np
from jax import lax
from jax.experimental import pallas as pl
from jax.experimental.pallas import tpu as pltpu

# MXU operand dtype (accumulation is always f32).
_MXU_DTYPE = jnp.bfloat16

# Safe on every generation: >= default scoped limits (16/32/32 MiB) and below
# v7x's 64 MiB physical VMEM; v5e/v6e (128 MiB physical) could go to ~100 MiB.
_VMEM_LIMIT_BYTES = 48 * 1024 * 1024


def _pick_row_tile(m):
    """Largest row tile (multiple of 8 preferred) that divides m."""
    for t in (512, 256, 128, 64, 32, 16, 8):
        if m >= t and m % t == 0:
            return t
    return m


# ----------------------------------------------------------------------------
# Kernel A: fused QKV projection, emitting q / k / v head-major.
#   x_ref : (tm, D) f32          w_ref : (D, 3*Dh) bf16  (one head's q|k|v cols)
#   q/k/v out refs : (tm, Dh) bf16, written into (H, B*N, Dh) arrays.
# ----------------------------------------------------------------------------
def _qkv_proj_kernel(x_ref, w_ref, q_ref, k_ref, v_ref):
    x = x_ref[...].astype(_MXU_DTYPE)                 # (tm, D)
    w = w_ref[...]                                    # (D, 3*Dh) bf16 (pre-cast)
    y = jnp.dot(x, w, preferred_element_type=jnp.float32)   # (tm, 3*Dh) f32
    dh = q_ref.shape[-1]
    q_ref[...] = y[:, :dh].astype(q_ref.dtype)
    k_ref[...] = y[:, dh:2 * dh].astype(k_ref.dtype)
    v_ref[...] = y[:, 2 * dh:].astype(v_ref.dtype)


def pallas_qkv_proj(x, w_qkv_h):
    """x: (B*N, D) f32; w_qkv_h: (H, D, 3*Dh) bf16 -> (q, k, v) each (H, B*N, Dh) bf16."""
    rows, D = x.shape
    H, _, three_dh = w_qkv_h.shape
    Dh = three_dh // 3
    tm = _pick_row_tile(rows)
    # TODO(synk): add a K ("arbitrary") grid axis with an f32 VMEM accumulator
    # once D outgrows a single VMEM tile; at these sizes one K tile fits.
    out_sds = jax.ShapeDtypeStruct((H, rows, Dh), jnp.bfloat16)
    out_spec = pl.BlockSpec((None, tm, Dh), lambda i, h: (h, i, 0))
    return pl.pallas_call(
        _qkv_proj_kernel,
        out_shape=(out_sds, out_sds, out_sds),
        grid=(rows // tm, H),
        in_specs=[
            # x block index is independent of h (inner axis) -> fetched once per
            # row tile and reused across all H inner steps.
            pl.BlockSpec((tm, D), lambda i, h: (i, 0)),
            pl.BlockSpec((None, D, three_dh), lambda i, h: (h, 0, 0)),
        ],
        out_specs=(out_spec, out_spec, out_spec),
        compiler_params=pltpu.CompilerParams(
            dimension_semantics=("parallel", "arbitrary"),
            vmem_limit_bytes=_VMEM_LIMIT_BYTES),
    )(x, w_qkv_h)


# ----------------------------------------------------------------------------
# Kernel B: Performer FAVOR+ attention, one grid step per (batch, head).
#   q/k/v refs : (N, Dh) bf16      p_ref : (M, Dh) bf16  (already scaled by dn)
#   o_ref      : (N, Dh) bf16
# All dots are plain 2-D MXU matmuls; exp / feature / denominator math is f32.
# ----------------------------------------------------------------------------
def _performer_head_kernel(q_ref, k_ref, v_ref, p_ref, o_ref, *,
                           log_ratio, ratio_eps, half_dn2):
    q = q_ref[...]                                    # (N, Dh) bf16
    k = k_ref[...]
    v = v_ref[...]
    p = p_ref[...]                                    # (M, Dh) bf16, dn folded in

    contract_last = (((1,), (1,)), ((), ()))          # A @ B.T
    q_dash = lax.dot_general(q, p, contract_last,
                             preferred_element_type=jnp.float32)      # (N, M)
    k_dash = lax.dot_general(k, p, contract_last,
                             preferred_element_type=jnp.float32)      # (N, M)

    qf = q.astype(jnp.float32)
    kf = k.astype(jnp.float32)
    diag_q = half_dn2 * jnp.sum(qf * qf, axis=-1, keepdims=True)      # (N, 1)
    diag_k = half_dn2 * jnp.sum(kf * kf, axis=-1, keepdims=True)      # (N, 1)

    # Query features: per-row max; key features: per-(batch, head) global max
    # over (n, m) -- exact within this grid step, no two-pass needed.
    q_max = jnp.max(q_dash, axis=-1, keepdims=True)                   # (N, 1)
    k_max = jnp.max(jnp.max(k_dash, axis=-1, keepdims=True),
                    axis=0, keepdims=True)                            # (1, 1)

    # ratio folded into the exponent: ratio*(exp(x)+eps) == exp(x+log_ratio)+ratio*eps
    q_feat = jnp.exp(q_dash - diag_q - q_max + log_ratio) + ratio_eps  # (N, M) f32
    k_feat = jnp.exp(k_dash - diag_k - k_max + log_ratio) + ratio_eps  # (N, M) f32

    # Linear-attention denominator (VPU), reciprocal on the EUP slot.
    k_cumsum = jnp.sum(k_feat, axis=0, keepdims=True)                  # (1, M)
    denom = jnp.sum(q_feat * k_cumsum, axis=-1, keepdims=True)         # (N, 1)
    d_inv = pl.reciprocal(denom, approx=True)

    # ctx = k_feat^T @ v  (contract N),  out = q_feat @ ctx  (contract M).
    ctx = lax.dot_general(k_feat.astype(_MXU_DTYPE), v,
                          (((0,), (0,)), ((), ())),
                          preferred_element_type=jnp.float32)          # (M, Dh)
    out = lax.dot_general(q_feat.astype(_MXU_DTYPE), ctx.astype(_MXU_DTYPE),
                          (((1,), (0,)), ((), ())),
                          preferred_element_type=jnp.float32)          # (N, Dh)
    o_ref[...] = (out * d_inv).astype(o_ref.dtype)


def pallas_performer_attention(q, k, v, proj_dn, *, B, N):
    """q/k/v: (H, B*N, Dh) bf16; proj_dn: (M, Dh) bf16 -> (H, B*N, Dh) bf16."""
    H, BN, Dh = q.shape
    M = proj_dn.shape[0]
    ratio = float(M) ** (-0.5)
    kernel = functools.partial(
        _performer_head_kernel,
        log_ratio=float(math.log(ratio)),
        ratio_eps=float(ratio * 1e-4),
        half_dn2=float(0.5 / math.sqrt(Dh)),
    )
    qkv_spec = pl.BlockSpec((None, N, Dh), lambda b, h: (h, b, 0))
    # TODO(synk): for very long sequences (N*M f32 intermediates approaching the
    # VMEM limit) add an N-tile grid axis for the q path and make k_max /
    # k_cumsum / ctx a separate first pass (running per-head key max).
    return pl.pallas_call(
        kernel,
        out_shape=jax.ShapeDtypeStruct((H, BN, Dh), jnp.bfloat16),
        grid=(B, H),
        in_specs=[
            qkv_spec, qkv_spec, qkv_spec,
            pl.BlockSpec((M, Dh), lambda b, h: (0, 0)),   # constant block: fetched once
        ],
        out_specs=pl.BlockSpec((None, N, Dh), lambda b, h: (h, b, 0)),
        compiler_params=pltpu.CompilerParams(
            dimension_semantics=("parallel", "parallel"),
            vmem_limit_bytes=_VMEM_LIMIT_BYTES),
    )(q, k, v, proj_dn)


# ----------------------------------------------------------------------------
# Kernel C: output projection, contracting the head axis with an accumulator.
#   a_ref : (tm, Dh) bf16   w_ref : (Dh, Dout) bf16   b_ref : (1, Dout) f32
#   o_ref : (tm, Dout) f32  acc   : (tm, Dout) f32 VMEM scratch
# ----------------------------------------------------------------------------
def _out_proj_kernel(a_ref, w_ref, b_ref, o_ref, acc_ref):
    h = pl.program_id(1)

    @pl.when(h == 0)
    def _():
        acc_ref[...] = jnp.zeros_like(acc_ref)

    acc_ref[...] += jnp.dot(a_ref[...], w_ref[...],
                            preferred_element_type=jnp.float32)

    @pl.when(h == pl.num_programs(1) - 1)
    def _():
        o_ref[...] = (acc_ref[...] + b_ref[...].astype(jnp.float32)).astype(o_ref.dtype)


def pallas_out_proj(attn, wo_h, bo):
    """attn: (H, B*N, Dh) bf16; wo_h: (H, Dh, Dout) bf16; bo: (Dout,) f32 -> (B*N, Dout) f32."""
    H, BN, Dh = attn.shape
    Dout = wo_h.shape[-1]
    tm = _pick_row_tile(BN)
    return pl.pallas_call(
        _out_proj_kernel,
        out_shape=jax.ShapeDtypeStruct((BN, Dout), jnp.float32),
        grid=(BN // tm, H),
        in_specs=[
            pl.BlockSpec((None, tm, Dh), lambda i, h: (h, i, 0)),
            pl.BlockSpec((None, Dh, Dout), lambda i, h: (h, 0, 0)),
            pl.BlockSpec((1, Dout), lambda i, h: (0, 0)),
        ],
        out_specs=pl.BlockSpec((tm, Dout), lambda i, h: (i, 0)),
        scratch_shapes=[pltpu.VMEM((tm, Dout), jnp.float32)],
        compiler_params=pltpu.CompilerParams(
            dimension_semantics=("parallel", "arbitrary"),
            vmem_limit_bytes=_VMEM_LIMIT_BYTES),
    )(attn, wo_h, bo.reshape(1, Dout))


# ----------------------------------------------------------------------------
# Parameter construction (deterministic, mirrors the PyTorch __init__ shapes)
# ----------------------------------------------------------------------------
def gaussian_orthogonal_random_matrix(key, nb_rows, nb_cols):
    nb_full = nb_rows // nb_cols
    keys = jax.random.split(key, nb_full + 2)
    blocks = []
    for i in range(nb_full):
        g = jax.random.normal(keys[i], (nb_cols, nb_cols), dtype=jnp.float32)
        qm, _ = jnp.linalg.qr(g)
        blocks.append(qm.T)
    rem = nb_rows - nb_full * nb_cols
    if rem > 0:
        g = jax.random.normal(keys[nb_full], (nb_cols, nb_cols), dtype=jnp.float32)
        qm, _ = jnp.linalg.qr(g)
        blocks.append(qm.T[:rem])
    final = jnp.concatenate(blocks, axis=0)
    # scaling == 0: row norms of an iid gaussian matrix
    mult = jnp.linalg.norm(
        jax.random.normal(keys[-1], (nb_rows, nb_cols), dtype=jnp.float32), axis=1
    )
    return mult[:, None] * final


def make_params(key, dim, heads, dim_head):
    inner = heads * dim_head
    # TODO(synk): at production dim_head=64 this gives M=266; rounding M up to a
    # multiple of 128 makes every (N, M) feature tile lane-dense (unmasked vst).
    nb_features = int(dim_head * math.log(dim_head))
    ks = jax.random.split(key, 6)
    scale = 1.0 / math.sqrt(dim)
    wq = jax.random.normal(ks[0], (dim, inner), jnp.float32) * scale   # qkv_bias=False
    wk = jax.random.normal(ks[1], (dim, inner), jnp.float32) * scale
    wv = jax.random.normal(ks[2], (dim, inner), jnp.float32) * scale
    wo = jax.random.normal(ks[3], (inner, dim), jnp.float32) * (1.0 / math.sqrt(inner))
    bo = jax.random.normal(ks[4], (dim,), jnp.float32) * 0.01          # attn_out_bias=True
    proj = gaussian_orthogonal_random_matrix(ks[5], nb_features, dim_head)

    dn = dim_head ** (-0.25)
    # Head-major fused QKV weights, (H, D, 3*Dh): for head h columns are [q|k|v].
    wq3 = wq.reshape(dim, heads, dim_head)
    wk3 = wk.reshape(dim, heads, dim_head)
    wv3 = wv.reshape(dim, heads, dim_head)
    w_qkv_h = jnp.concatenate([wq3, wk3, wv3], axis=-1).transpose(1, 0, 2)

    return {
        "heads": heads,
        "dim_head": dim_head,
        # f32 originals (reference path)
        "wq": wq, "wk": wk, "wv": wv, "wo": wo, "bo": bo, "proj": proj,
        # Pallas-path weights: pre-cast bf16, dn folded into the RF matrix.
        "w_qkv_h": w_qkv_h.astype(jnp.bfloat16),        # (H, D, 3*Dh)
        "wo_h": wo.reshape(heads, dim_head, dim).astype(jnp.bfloat16),  # (H, Dh, D)
        "proj_dn": (dn * proj).astype(jnp.bfloat16),     # (M, Dh)
    }


# ----------------------------------------------------------------------------
# Forward pass (glue in plain JAX — only free reshapes, no transposes/slices)
# ----------------------------------------------------------------------------
def attention_forward(x, params):
    # pos_emb=None, context=None, mask=None, local_heads=0, dropout eval-mode.
    # TODO(synk): rotary pos-emb / masking / LocalAttention paths not exercised
    #             (module defaults: pos_emb=None, mask=None, local_heads=0).
    B, N, D = x.shape
    xf = x.reshape(B * N, D)
    q, k, v = pallas_qkv_proj(xf, params["w_qkv_h"])             # (H, B*N, Dh) bf16 each
    attn = pallas_performer_attention(q, k, v, params["proj_dn"], B=B, N=N)
    out = pallas_out_proj(attn, params["wo_h"], params["bo"])    # (B*N, D) f32
    return out.reshape(B, N, D)


# ----------------------------------------------------------------------------
# Pure-JAX f32 reference (mirrors the PyTorch math) for a correctness check
# ----------------------------------------------------------------------------
def _ref_softmax_kernel(data, proj, is_query, eps=1e-4):
    dn = data.shape[-1] ** (-0.25)
    ratio = proj.shape[0] ** (-0.5)
    data_dash = jnp.einsum("bhnd,md->bhnm", dn * data, proj)
    diag = jnp.sum(data ** 2, axis=-1, keepdims=True) * 0.5 * dn ** 2
    if is_query:
        mx = jnp.max(data_dash, axis=-1, keepdims=True)
    else:
        mx = jnp.max(data_dash, axis=(-1, -2), keepdims=True)
    return ratio * (jnp.exp(data_dash - diag - mx) + eps)


def ref_forward(x, params):
    B, N, D = x.shape
    H, Dh = params["heads"], params["dim_head"]
    q = x @ params["wq"]
    k = x @ params["wk"]
    v = x @ params["wv"]
    sp = lambda t: t.reshape(B, N, H, Dh).transpose(0, 2, 1, 3)
    q, k, v = map(sp, (q, k, v))
    qf = _ref_softmax_kernel(q, params["proj"], True)
    kf = _ref_softmax_kernel(k, params["proj"], False)
    k_cumsum = kf.sum(axis=-2)
    d_inv = 1.0 / jnp.einsum("bhnm,bhm->bhn", qf, k_cumsum)
    context = jnp.einsum("bhnm,bhnd->bhmd", kf, v)
    out = jnp.einsum("bhmd,bhnm,bhn->bhnd", context, qf, d_inv)
    out = out.transpose(0, 2, 1, 3).reshape(B, N, H * Dh)
    return out @ params["wo"] + params["bo"]


# ----------------------------------------------------------------------------
if __name__ == "__main__":
    key = jax.random.PRNGKey(0)
    kx, kp = jax.random.split(key)

    B, N, dim = 2, 8, 32
    heads, dim_head = 4, 8

    x = jax.random.normal(kx, (B, N, dim), dtype=jnp.float32)
    params = make_params(kp, dim, heads, dim_head)

    out = jax.block_until_ready(attention_forward(x, params))
    ref = jax.block_until_ready(ref_forward(x, params))

    # Loose tolerance: the Pallas path carries q/k/v and the attention output in
    # bf16 and uses bf16 MXU operands + approx reciprocal; reference is pure f32.
    np.testing.assert_allclose(np.asarray(out), np.asarray(ref), rtol=7e-2, atol=7e-2)

    print("KERNEL_OK")
</pallas_src>

<mosaic_0001>
module attributes {stable_mosaic.version = 11 : i64} {
  func.func @_qkv_proj_kernel(%arg0: i32, %arg1: i32, %arg2: memref<16x32xf32, #tpu.memory_space<vmem>>, %arg3: memref<1x32x24xbf16, #tpu.memory_space<vmem>>, %arg4: memref<1x16x8xbf16, #tpu.memory_space<vmem>>, %arg5: memref<1x16x8xbf16, #tpu.memory_space<vmem>>, %arg6: memref<1x16x8xbf16, #tpu.memory_space<vmem>>) attributes {dimension_semantics = [#tpu.dimension_semantics<parallel>, #tpu.dimension_semantics<arbitrary>], iteration_bounds = array<i64: 1, 4>, scalar_prefetch = 0 : i64, scratch_operands = 0 : i64, tpu.core_type = #tpu.core_type<tc>, window_params = [{transform_indices = @transform_0, window_bounds = array<i64: 16, 32>}, {transform_indices = @transform_1, window_bounds = array<i64: 1, 32, 24>}, {transform_indices = @transform_2, window_bounds = array<i64: 1, 16, 8>}, {transform_indices = @transform_3, window_bounds = array<i64: 1, 16, 8>}, {transform_indices = @transform_4, window_bounds = array<i64: 1, 16, 8>}]} {
    %c0 = arith.constant 0 : index
    %c0_0 = arith.constant 0 : index
    %0 = vector.load %arg2[%c0, %c0_0] : memref<16x32xf32, #tpu.memory_space<vmem>>, vector<16x32xf32>
    %1 = arith.truncf %0 : vector<16x32xf32> to vector<16x32xbf16>
    %c0_1 = arith.constant 0 : index
    %c0_2 = arith.constant 0 : index
    %c0_3 = arith.constant 0 : index
    %2 = vector.load %arg3[%c0_1, %c0_2, %c0_3] : memref<1x32x24xbf16, #tpu.memory_space<vmem>>, vector<1x32x24xbf16>
    %3 = vector.shape_cast %2 : vector<1x32x24xbf16> to vector<32x24xbf16>
    %cst = arith.constant dense<0.000000e+00> : vector<16x24xf32>
    %4 = tpu.matmul %1, %3, %cst {dimension_numbers = #tpu.dot_dimension_numbers<[1], [0], [0], [1], [0, 0, 1, 1], [], []>} : vector<16x32xbf16>, vector<32x24xbf16>, vector<16x24xf32> -> vector<16x24xf32>
    %5 = vector.extract_strided_slice %4 {offsets = [0, 0], sizes = [16, 8], strides = [1, 1]} : vector<16x24xf32> to vector<16x8xf32>
    %6 = arith.truncf %5 : vector<16x8xf32> to vector<16x8xbf16>
    %c0_4 = arith.constant 0 : index
    %c0_5 = arith.constant 0 : index
    %c0_6 = arith.constant 0 : index
    %7 = vector.load %arg4[%c0_4, %c0_5, %c0_6] : memref<1x16x8xbf16, #tpu.memory_space<vmem>>, vector<1x16x8xbf16>
    %8 = vector.shape_cast %7 : vector<1x16x8xbf16> to vector<16x8xbf16>
    %9 = vector.shape_cast %6 : vector<16x8xbf16> to vector<1x16x8xbf16>
    tpu.vector_store %arg4[%c0_4, %c0_5, %c0_6], %9 {strides = array<i32>} : memref<1x16x8xbf16, #tpu.memory_space<vmem>>, vector<1x16x8xbf16>,
    %10 = vector.extract_strided_slice %4 {offsets = [0, 8], sizes = [16, 8], strides = [1, 1]} : vector<16x24xf32> to vector<16x8xf32>
    %11 = arith.truncf %10 : vector<16x8xf32> to vector<16x8xbf16>
    %c0_7 = arith.constant 0 : index
    %c0_8 = arith.constant 0 : index
    %c0_9 = arith.constant 0 : index
    %12 = vector.load %arg5[%c0_7, %c0_8, %c0_9] : memref<1x16x8xbf16, #tpu.memory_space<vmem>>, vector<1x16x8xbf16>
    %13 = vector.shape_cast %12 : vector<1x16x8xbf16> to vector<16x8xbf16>
    %14 = vector.shape_cast %11 : vector<16x8xbf16> to vector<1x16x8xbf16>
    tpu.vector_store %arg5[%c0_7, %c0_8, %c0_9], %14 {strides = array<i32>} : memref<1x16x8xbf16, #tpu.memory_space<vmem>>, vector<1x16x8xbf16>,
    %15 = vector.extract_strided_slice %4 {offsets = [0, 16], sizes = [16, 8], strides = [1, 1]} : vector<16x24xf32> to vector<16x8xf32>
    %16 = arith.truncf %15 : vector<16x8xf32> to vector<16x8xbf16>
    %c0_10 = arith.constant 0 : index
    %c0_11 = arith.constant 0 : index
    %c0_12 = arith.constant 0 : index
    %17 = vector.load %arg6[%c0_10, %c0_11, %c0_12] : memref<1x16x8xbf16, #tpu.memory_space<vmem>>, vector<1x16x8xbf16>
    %18 = vector.shape_cast %17 : vector<1x16x8xbf16> to vector<16x8xbf16>
    %19 = vector.shape_cast %16 : vector<16x8xbf16> to vector<1x16x8xbf16>
    tpu.vector_store %arg6[%c0_10, %c0_11, %c0_12], %19 {strides = array<i32>} : memref<1x16x8xbf16, #tpu.memory_space<vmem>>, vector<1x16x8xbf16>,
    return
  }
  func.func @transform_0(%arg0: i32, %arg1: i32) -> (i32, i32) {
    %c0_i32 = arith.constant 0 : i32
    %c0_i32_0 = arith.constant 0 : i32
    return %arg0, %c0_i32 : i32, i32
  }
  func.func @transform_1(%arg0: i32, %arg1: i32) -> (i32, i32, i32) {
    %c0_i32 = arith.constant 0 : i32
    %c0_i32_0 = arith.constant 0 : i32
    %c0_i32_1 = arith.constant 0 : i32
    return %arg1, %c0_i32, %c0_i32_0 : i32, i32, i32
  }
  func.func @transform_2(%arg0: i32, %arg1: i32) -> (i32, i32, i32) {
    %c0_i32 = arith.constant 0 : i32
    %c0_i32_0 = arith.constant 0 : i32
    return %arg1, %arg0, %c0_i32 : i32, i32, i32
  }
  func.func @transform_3(%arg0: i32, %arg1: i32) -> (i32, i32, i32) {
    %c0_i32 = arith.constant 0 : i32
    %c0_i32_0 = arith.constant 0 : i32
    return %arg1, %arg0, %c0_i32 : i32, i32, i32
  }
  func.func @transform_4(%arg0: i32, %arg1: i32) -> (i32, i32, i32) {
    %c0_i32 = arith.constant 0 : i32
    %c0_i32_0 = arith.constant 0 : i32
    return %arg1, %arg0, %c0_i32 : i32, i32, i32
  }
}

</mosaic_0001>

<llo_original>
// kernel: tpu_custom_call.1
$region0: #{tpu_custom_call.1}
  #allocation0 [shape = 'u32[]', space=smem, size = 0x4, offset = 0x4, fixed_abs, tag = 'smem constant byte address 0x4 - core index']
  #allocation1 [shape = 'u32[144,128]{1,0:T(1,128)}', space=vmem, size = 0x12000, scoped, tag = 'internal scratch']
  %s0 = inlined_call_operand.vmem [shape: f32[16,32], index: 0, kind: input, shape index: {}]
  %s1 = inlined_call_operand.vmem [shape: bf16[4,32,24], index: 1, kind: input, shape index: {}]
  %s2 = inlined_call_operand.vmem [shape: bf16[4,16,8], index: 2, kind: output, shape index: {0}]
  %s3 = inlined_call_operand.vmem [shape: bf16[4,16,8], index: 3, kind: output, shape index: {1}]
  %s4 = inlined_call_operand.vmem [shape: bf16[4,16,8], index: 4, kind: output, shape index: {2}]
  %5 = xla_tuple %s2, %s3, %s4
  %s6 = sld [smem:[#allocation0]]
  $region57: #{tpu_custom_call.1} parent=0
    _
  %s8 = ssub.s32 1, %s6
  %s9 = scalar_select 0, %s8, %s6
  loop: start=0, step=1, limit=6
  $region2: #{tpu_custom_call.1} parent=0 // loop_pre_header
    _
  $region3: #{tpu_custom_call.1} parent=0 // loop_header
    %s11 = sphi 0, %s15
    %p12 = scmp.ge.s32.totalorder %s11, 6
    %s18 = sphi 0, %s30
    %s19 = sphi 0, %s26
    %s20 = sphi 0, %s18
    %s21 = sphi 0, %s19
    %s22 = sphi 0, %s20
    %s23 = sphi 0, %s21
    %s33 = sphi 0, %s35
    %s36 = sphi 0, %s33
    %s37 = sphi 0, %s36
    %s53 = sphi 0, %s37
    %s59 = sphi 0, %s61
    %s62 = sphi 0, %s59
    %s63 = sphi 0, %s62
    %s79 = sphi 0, %s63
    %s87 = sphi 0, %s89
    %s90 = sphi 0, %s87
    %s91 = sphi 0, %s90
    %s107 = sphi 0, %s91
    %s115 = sphi 0, %s117
    %s118 = sphi 0, %s115
    %s119 = sphi 0, %s118
    %s135 = sphi 0, %s119
    %s143 = sphi 0, %s145
    %s146 = sphi 0, %s143
    %s147 = sphi 0, %s146
    %s163 = sphi 0, %s147
  $region4: #{tpu_custom_call.1} parent=0 // loop_header_branch
    %14 = sbr.rel (%p12) target = $region8
  $region5: #{tpu_custom_call.1} parent=0 // loop_body
    %s16 = ssub.s32 %s11, 1
    %s17 = ssub.s32 %s11, 2
    %s24 = sadd.s32 1, %s19
    %p25 = scmp.ge.s32.totalorder %s24, 4
    %s26 = scalar_select %p25, 0, %s24
    %s27 = sadd.s32 1, %s18
    %s28 = scalar_select %p25, %s27, %s18
    %p29 = scmp.ge.s32.totalorder %s28, 1
    %s30 = scalar_select %p29, 0, %s28
    %s31 = ssub.s32 %s18, %s30
    %p32 = scmp.eq.s32.totalorder %s31, 0
    %s34 = sadd.s32 %s33, 1
    %s35 = scalar_select %p32, %s33, %s34
    %p38 = pneg %p32
    %p39 = scmp.eq.s32.totalorder %s11, 3
    %p40 = por %p38, %p39
    %p41 = scmp.ne.s32.totalorder %s33, %s36
    %p42 = scmp.eq.s32.totalorder %s11, 0
    %p43 = por %p41, %p42
    %p44 = scmp.ne.s32.totalorder %s33, %s36
    %p45 = scmp.eq.s32.totalorder %s16, 3
    %p46 = por %p44, %p45
    %p47 = scmp.ne.s32.totalorder %s36, %s37
    %p48 = scmp.eq.s32.totalorder %s16, 0
    %p49 = por %p47, %p48
    %p50 = scmp.ne.s32.totalorder %s36, %s37
    %p51 = scmp.eq.s32.totalorder %s17, 3
    %p52 = por %p50, %p51
    %p54 = scmp.ne.s32.totalorder %s37, %s53
    %p55 = scmp.eq.s32.totalorder %s17, 0
    %p56 = por %p54, %p55
    %s57 = ssub.s32 %s19, %s26
    %p58 = scmp.eq.s32.totalorder %s57, 0
    %s60 = sadd.s32 %s59, 1
    %s61 = scalar_select %p58, %s59, %s60
    %p64 = pneg %p58
    %p65 = scmp.eq.s32.totalorder %s11, 3
    %p66 = por %p64, %p65
    %p67 = scmp.ne.s32.totalorder %s59, %s62
    %p68 = scmp.eq.s32.totalorder %s11, 0
    %p69 = por %p67, %p68
    %p70 = scmp.ne.s32.totalorder %s59, %s62
    %p71 = scmp.eq.s32.totalorder %s16, 3
    %p72 = por %p70, %p71
    %p73 = scmp.ne.s32.totalorder %s62, %s63
    %p74 = scmp.eq.s32.totalorder %s16, 0
    %p75 = por %p73, %p74
    %p76 = scmp.ne.s32.totalorder %s62, %s63
    %p77 = scmp.eq.s32.totalorder %s17, 3
    %p78 = por %p76, %p77
    %p80 = scmp.ne.s32.totalorder %s63, %s79
    %p81 = scmp.eq.s32.totalorder %s17, 0
    %p82 = por %p80, %p81
    %s83 = ssub.s32 %s19, %s26
    %s84 = ssub.s32 %s18, %s30
    %s85 = sor.u32 %s83, %s84
    %p86 = scmp.eq.s32.totalorder %s85, 0
    %s88 = sadd.s32 %s87, 1
    %s89 = scalar_select %p86, %s87, %s88
    %p92 = pneg %p86
    %p93 = scmp.eq.s32.totalorder %s11, 3
    %p94 = por %p92, %p93
    %p95 = scmp.ne.s32.totalorder %s87, %s90
    %p96 = scmp.eq.s32.totalorder %s11, 0
    %p97 = por %p95, %p96
    %p98 = scmp.ne.s32.totalorder %s87, %s90
    %p99 = scmp.eq.s32.totalorder %s16, 3
    %p100 = por %p98, %p99
    %p101 = scmp.ne.s32.totalorder %s90, %s91
    %p102 = scmp.eq.s32.totalorder %s16, 0
    %p103 = por %p101, %p102
    %p104 = scmp.ne.s32.totalorder %s90, %s91
    %p105 = scmp.eq.s32.totalorder %s17, 3
    %p106 = por %p104, %p105
    %p108 = scmp.ne.s32.totalorder %s91, %s107
    %p109 = scmp.eq.s32.totalorder %s17, 0
    %p110 = por %p108, %p109
    %s111 = ssub.s32 %s19, %s26
    %s112 = ssub.s32 %s18, %s30
    %s113 = sor.u32 %s111, %s112
    %p114 = scmp.eq.s32.totalorder %s113, 0
    %s116 = sadd.s32 %s115, 1
    %s117 = scalar_select %p114, %s115, %s116
    %p120 = pneg %p114
    %p121 = scmp.eq.s32.totalorder %s11, 3
    %p122 = por %p120, %p121
    %p123 = scmp.ne.s32.totalorder %s115, %s118
    %p124 = scmp.eq.s32.totalorder %s11, 0
    %p125 = por %p123, %p124
    %p126 = scmp.ne.s32.totalorder %s115, %s118
    %p127 = scmp.eq.s32.totalorder %s16, 3
    %p128 = por %p126, %p127
    %p129 = scmp.ne.s32.totalorder %s118, %s119
    %p130 = scmp.eq.s32.totalorder %s16, 0
    %p131 = por %p129, %p130
    %p132 = scmp.ne.s32.totalorder %s118, %s119
    %p133 = scmp.eq.s32.totalorder %s17, 3
    %p134 = por %p132, %p133
    %p136 = scmp.ne.s32.totalorder %s119, %s135
    %p137 = scmp.eq.s32.totalorder %s17, 0
    %p138 = por %p136, %p137
    %s139 = ssub.s32 %s19, %s26
    %s140 = ssub.s32 %s18, %s30
    %s141 = sor.u32 %s139, %s140
    %p142 = scmp.eq.s32.totalorder %s141, 0
    %s144 = sadd.s32 %s143, 1
    %s145 = scalar_select %p142, %s143, %s144
    %p148 = pneg %p142
    %p149 = scmp.eq.s32.totalorder %s11, 3
    %p150 = por %p148, %p149
    %p151 = scmp.ne.s32.totalorder %s143, %s146
    %p152 = scmp.eq.s32.totalorder %s11, 0
    %p153 = por %p151, %p152
    %p154 = scmp.ne.s32.totalorder %s143, %s146
    %p155 = scmp.eq.s32.totalorder %s16, 3
    %p156 = por %p154, %p155
    %p157 = scmp.ne.s32.totalorder %s146, %s147
    %p158 = scmp.eq.s32.totalorder %s16, 0
    %p159 = por %p157, %p158
    %p160 = scmp.ne.s32.totalorder %s146, %s147
    %p161 = scmp.eq.s32.totalorder %s17, 3
    %p162 = por %p160, %p161
    %p164 = scmp.ne.s32.totalorder %s147, %s163
    %p165 = scmp.eq.s32.totalorder %s17, 0
    %p166 = por %p164, %p165
    %p167 = scmp.le.s32.totalorder 1, %s11
    %p168 = scmp.lt.s32.totalorder %s11, 5
    %p169 = pnand %p167, %p168
    %p170 = pneg %p169
    // Predicated region
    $region9: #{tpu_custom_call.1} parent=5 // pred_check
      _
    $region10: #{tpu_custom_call.1} parent=5 // pred_check_branch
      %172 = sbr.rel (%p169) target = $region12
    $region11: #{tpu_custom_call.1} parent=5 // pred_region
      %s173 = ssub.s32 %s11, 1
      // Predicated region
      $region13: #{tpu_custom_call.1} parent=11 // pred_check
        %p174 = pneg %p49
      $region14: #{tpu_custom_call.1} parent=11 // pred_check_branch
        %176 = sbr.rel (%p174) target = $region16
      $region15: #{tpu_custom_call.1} parent=11 // pred_region
        %s177 = smul.u32 2, %s20
        %p178 = scmp.lt.s32.totalorder %s177, 1
        %s179 = scalar_select %p178, %s177, 1
        %s180 = smul.addr %s179, 8
        %s181 = scalar_lea.vmem %s0, %s180
        %s182 = smul.u32 2, %s20
      $region16: #{tpu_custom_call.1} parent=11 // pred_fallthru
        _
    $region12: #{tpu_custom_call.1} parent=5 // pred_fallthru
      _
    %p183 = scmp.lt.s32.totalorder %s11, 4
    // Predicated region
    $region17: #{tpu_custom_call.1} parent=5 // pred_check
      %p184 = pneg %p183
    $region18: #{tpu_custom_call.1} parent=5 // pred_check_branch
      %186 = sbr.rel (%p184) target = $region20
    $region19: #{tpu_custom_call.1} parent=5 // pred_region
      // Predicated region
      $region21: #{tpu_custom_call.1} parent=19 // pred_check
        %p187 = pneg %p69
      $region22: #{tpu_custom_call.1} parent=19 // pred_check_branch
        %189 = sbr.rel (%p187) target = $region24
      $region23: #{tpu_custom_call.1} parent=19 // pred_region
        %p190 = scmp.lt.s32.totalorder %s19, 3
        %s191 = scalar_select %p190, %s19, 3
        %s192 = smul.addr %s191, 4
        %s193 = smul.addr %s192, 4
        %s194 = scalar_lea.vmem %s1, %s193
      $region24: #{tpu_custom_call.1} parent=19 // pred_fallthru
        _
    $region20: #{tpu_custom_call.1} parent=5 // pred_fallthru
      _
    %p195 = scmp.le.s32.totalorder 1, %s11
    %p196 = scmp.lt.s32.totalorder %s11, 5
    %p197 = pnand %p195, %p196
    %p198 = pneg %p197
    // Predicated region
    $region25: #{tpu_custom_call.1} parent=5 // pred_check
      _
    $region26: #{tpu_custom_call.1} parent=5 // pred_check_branch
      %200 = sbr.rel (%p197) target = $region28
    $region27: #{tpu_custom_call.1} parent=5 // pred_region
      %s201 = ssub.s32 %s11, 1
      %s202 = smul.u32 2, %s20
      %p203 = scmp.lt.s32.totalorder %s202, 1
      %s204 = scalar_select %p203, %s202, 1
      %s205 = smul.addr %s204, 8
      %s206 = scalar_lea.vmem %s0, %s205
      %p207 = pneg %p49
      %p208 = pneg %p46
      %p209 = scmp.lt.s32.totalorder %s21, 3
      %s210 = scalar_select %p209, %s21, 3
      %s211 = smul.addr %s210, 4
      %s212 = smul.addr %s211, 4
      %s213 = scalar_lea.vmem %s1, %s212
      %p214 = pneg %p75
      %p215 = pneg %p72
      %p216 = pneg %p103
      %p217 = pneg %p100
      %s218 = smul.u32 2, %s20
      %p219 = scmp.lt.s32.totalorder %s21, 3
      %s220 = scalar_select %p219, %s21, 3
      %p221 = scmp.lt.s32.totalorder %s218, 1
      %s222 = scalar_select %p221, %s218, 1
      %s223 = smul.addr %s220, 2
      %s224 = sadd.s32 %s222, %s223
      %s225 = smul.addr %s224, 4
      %s226 = scalar_lea.vmem %s2, %s225
      %p227 = pneg %p131
      %p228 = pneg %p128
      %s229 = smul.u32 2, %s20
      %p230 = scmp.lt.s32.totalorder %s21, 3
      %s231 = scalar_select %p230, %s21, 3
      %p232 = scmp.lt.s32.totalorder %s229, 1
      %s233 = scalar_select %p232, %s229, 1
      %s234 = smul.addr %s231, 2
      %s235 = sadd.s32 %s233, %s234
      %s236 = smul.addr %s235, 4
      %s237 = scalar_lea.vmem %s3, %s236
      %p238 = pneg %p159
      %p239 = pneg %p156
      %s240 = smul.u32 2, %s20
      %p241 = scmp.lt.s32.totalorder %s21, 3
      %s242 = scalar_select %p241, %s21, 3
      %p243 = scmp.lt.s32.totalorder %s240, 1
      %s244 = scalar_select %p243, %s240, 1
      %s245 = smul.addr %s242, 2
      %s246 = sadd.s32 %s244, %s245
      %s247 = smul.addr %s246, 4
      %s248 = scalar_lea.vmem %s4, %s247
      %s249 = smul.u32 2, %s20
      %p250 = scmp.lt.s32.totalorder %s249, 1
      %s251 = scalar_select %p250, %s249, 1
      %s252 = smul.addr %s251, 8
      %s253 = scalar_lea.vmem %s0, %s252
      %s254 = smul.u32 2, %s20
      %p255 = scmp.lt.s32.totalorder %s21, 3
      %s256 = scalar_select %p255, %s21, 3
      %s257 = smul.addr %s256, 4
      %s258 = smul.addr %s257, 4
      %s259 = scalar_lea.vmem %s1, %s258
      %s260 = smul.u32 2, %s20
      %p261 = scmp.lt.s32.totalorder %s21, 3
      %s262 = scalar_select %p261, %s21, 3
      %p263 = scmp.lt.s32.totalorder %s260, 1
      %s264 = scalar_select %p263, %s260, 1
      %s265 = smul.addr %s262, 2
      %s266 = sadd.s32 %s264, %s265
      %s267 = smul.addr %s266, 4
      %s268 = scalar_lea.vmem %s2, %s267
      %s269 = smul.u32 2, %s20
      %s270 = smul.u32 2, %s20
      %p271 = scmp.lt.s32.totalorder %s21, 3
      %s272 = scalar_select %p271, %s21, 3
      %p273 = scmp.lt.s32.totalorder %s270, 1
      %s274 = scalar_select %p273, %s270, 1
      %s275 = smul.addr %s272, 2
      %s276 = sadd.s32 %s274, %s275
      %s277 = smul.addr %s276, 4
      %s278 = scalar_lea.vmem %s3, %s277
      %s279 = smul.u32 2, %s20
      %s280 = smul.u32 2, %s20
      %p281 = scmp.lt.s32.totalorder %s21, 3
      %s282 = scalar_select %p281, %s21, 3
      %p283 = scmp.lt.s32.totalorder %s280, 1
      %s284 = scalar_select %p283, %s280, 1
      %s285 = smul.addr %s282, 2
      %s286 = sadd.s32 %s284, %s285
      %s287 = smul.addr %s286, 4
      %s288 = scalar_lea.vmem %s4, %s287
      %s289 = smul.u32 2, %s20
      %v291 = vld [vmem:[%s253] sm:$0xff]
      %v292 = vld [vmem:[%s253 + $0x8] sm:$0xff]
      %v293 = vpack.c.bf16 %v292, %v291
      %v294 = vld [vmem:[%s259] sm:$0xf]
      %v295 = vld [vmem:[%s259 + $0x4] sm:$0xf]
      %v296 = vld [vmem:[%s259 + $0x8] sm:$0xf]
      %v297 = vld [vmem:[%s259 + $0xc] sm:$0xf]
      %v302 = vunpack.c.l.b16 %v294
      %v303 = vunpack.c.l.b16 %v295
      %v304 = vunpack.c.l.b16 %v296
      %v305 = vunpack.c.l.b16 %v297
      %v306 = vpack.c.b16 %v303, %v302
      %v307 = vpack.c.b16 %v305, %v304
      %vm310 = vcmask 261120
      %v312 = vsel %vm310, %v293, 0
      %314 = vmatprep.subr.bf16.mxu0 0
      %315 = vmatpush1.bf16.msra.mxu0 %v306
      %316 = vmatprep.subr.bf16.mxu0 0
      %317 = vmatpush1.bf16.msra.mxu0 %v307
      %318 = vmatprep.subr.bf16.mxu0 0
      %319 = vmatpush1.bf16.msra.mxu0 0
      %320 = vmatprep.subr.bf16.mxu0 0
      %321 = vmatpush1.bf16.msra.mxu0 0
      %322 = vmatprep.subr.bf16.mxu0 0
      %323 = vmatpush1.bf16.msra.mxu0 0
      %324 = vmatprep.subr.bf16.mxu0 0
      %325 = vmatpush1.bf16.msra.mxu0 0
      %326 = vmatprep.subr.bf16.mxu0 0
      %327 = vmatpush1.bf16.msra.mxu0 0
      %328 = vmatprep.subr.bf16.mxu0 0
      %329 = vmatpush1.bf16.msra.mxu0 0
      %330 = vmatprep.subr.bf16.mxu0 0
      %331 = vmatpush1.bf16.msra.mxu0 0
      %332 = vmatprep.subr.bf16.mxu0 0
      %333 = vmatpush1.bf16.msra.mxu0 0
      %334 = vmatprep.subr.bf16.mxu0 0
      %335 = vmatpush1.bf16.msra.mxu0 0
      %336 = vmatprep.subr.bf16.mxu0 0
      %337 = vmatpush1.bf16.msra.mxu0 0
      %338 = vmatprep.subr.bf16.mxu0 0
      %339 = vmatpush1.bf16.msra.mxu0 0
      %340 = vmatprep.subr.bf16.mxu0 0
      %341 = vmatpush1.bf16.msra.mxu0 0
      %342 = vmatprep.subr.bf16.mxu0 0
      %343 = vmatpush1.bf16.msra.mxu0 0
      %344 = vmatprep.subr.bf16.mxu0 0
      %345 = vmatpush1.bf16.msra.mxu0 0
      %346 = vmatprep.mubr.bf16.mxu0 0
      %347 = vmatmul.mubr.bf16.gmra.mrb[0].mxu0 %v312
      %v348 = vpop.f32.mrb[0].mxu0
      %v349 = vadd.f32 0.0, %v348
      %v350 = vpop.f32.mrb[0].mxu0
      %v351 = vpop.f32.mrb[0].mxu0
      %v352 = vadd.f32 0.0, %v351
      %v353 = vpop.f32.mrb[0].mxu0
      %354 = vdwg.mxu0
      %v355 = vpack.c.bf16 %v352, %v349
      %v357 = vunpack.c.l.b16 %v355
      %v358 = vunpack.c.h.b16 %v355
      %v359 = vpack.c.b16 %v357, %v357
      %v360 = vpack.c.b16 %v358, %v358
      %vm363 = vcmask 60416
      %364 = vst.msk [vmem:[%s268] sm:$0xf] %vm363, %v359
      %365 = vst.msk [vmem:[%s268 + $0x4] sm:$0xf] %vm363, %v360
      %366 = vrot.lane.b32.xlu0 %v359, 120
      %v367 = vpop.permute.xlu0 %366
      %368 = vrot.lane.b32.xlu0 %v360, 120
      %v369 = vpop.permute.xlu0 %368
      %372 = vst.msk [vmem:[%s278] sm:$0xf] %vm363, %v367
      %373 = vst.msk [vmem:[%s278 + $0x4] sm:$0xf] %vm363, %v369
      %374 = vrot.lane.b32.xlu0 %v359, 112
      %v375 = vpop.permute.xlu0 %374
      %376 = vrot.lane.b32.xlu0 %v360, 112
      %v377 = vpop.permute.xlu0 %376
      %380 = vst.msk [vmem:[%s288] sm:$0xf] %vm363, %v375
      %381 = vst.msk [vmem:[%s288 + $0x4] sm:$0xf] %vm363, %v377
      %s382 = smul.u32 2, %s20
      %p383 = scmp.lt.s32.totalorder %s21, 3
      %s384 = scalar_select %p383, %s21, 3
      %p385 = scmp.lt.s32.totalorder %s382, 1
      %s386 = scalar_select %p385, %s382, 1
      %s387 = smul.addr %s384, 2
      %s388 = sadd.s32 %s386, %s387
      %s389 = smul.addr %s388, 4
      %s390 = scalar_lea.vmem %s2, %s389
      %s391 = smul.u32 2, %s20
      %p392 = scmp.lt.s32.totalorder %s21, 3
      %s393 = scalar_select %p392, %s21, 3
      %p394 = scmp.lt.s32.totalorder %s391, 1
      %s395 = scalar_select %p394, %s391, 1
      %s396 = smul.addr %s393, 2
      %s397 = sadd.s32 %s395, %s396
      %s398 = smul.addr %s397, 4
      %s399 = scalar_lea.vmem %s3, %s398
      %s400 = smul.u32 2, %s20
      %p401 = scmp.lt.s32.totalorder %s21, 3
      %s402 = scalar_select %p401, %s21, 3
      %p403 = scmp.lt.s32.totalorder %s400, 1
      %s404 = scalar_select %p403, %s400, 1
      %s405 = smul.addr %s402, 2
      %s406 = sadd.s32 %s404, %s405
      %s407 = smul.addr %s406, 4
      %s408 = scalar_lea.vmem %s4, %s407
      // Predicated region
      $region29: #{tpu_custom_call.1} parent=27 // pred_check
        %p409 = pneg %p100
      $region30: #{tpu_custom_call.1} parent=27 // pred_check_branch
        %411 = sbr.rel (%p409) target = $region32
      $region31: #{tpu_custom_call.1} parent=27 // pred_region
        %s412 = smul.u32 2, %s20
      $region32: #{tpu_custom_call.1} parent=27 // pred_fallthru
        _
      // Predicated region
      $region33: #{tpu_custom_call.1} parent=27 // pred_check
        %p413 = pneg %p128
      $region34: #{tpu_custom_call.1} parent=27 // pred_check_branch
        %415 = sbr.rel (%p413) target = $region36
      $region35: #{tpu_custom_call.1} parent=27 // pred_region
        %s416 = smul.u32 2, %s20
      $region36: #{tpu_custom_call.1} parent=27 // pred_fallthru
        _
      // Predicated region
      $region37: #{tpu_custom_call.1} parent=27 // pred_check
        %p417 = pneg %p156
      $region38: #{tpu_custom_call.1} parent=27 // pred_check_branch
        %419 = sbr.rel (%p417) target = $region40
      $region39: #{tpu_custom_call.1} parent=27 // pred_region
        %s420 = smul.u32 2, %s20
      $region40: #{tpu_custom_call.1} parent=27 // pred_fallthru
        _
    $region28: #{tpu_custom_call.1} parent=5 // pred_fallthru
      _
    %p421 = scmp.le.s32.totalorder 2, %s11
    // Predicated region
    $region41: #{tpu_custom_call.1} parent=5 // pred_check
      %p422 = pneg %p421
    $region42: #{tpu_custom_call.1} parent=5 // pred_check_branch
      %424 = sbr.rel (%p422) target = $region44
    $region43: #{tpu_custom_call.1} parent=5 // pred_region
      %s425 = ssub.s32 %s11, 2
      // Predicated region
      $region45: #{tpu_custom_call.1} parent=43 // pred_check
        %p426 = pneg %p106
      $region46: #{tpu_custom_call.1} parent=43 // pred_check_branch
        %428 = sbr.rel (%p426) target = $region48
      $region47: #{tpu_custom_call.1} parent=43 // pred_region
        %s429 = smul.u32 2, %s22
        %p430 = scmp.lt.s32.totalorder %s23, 3
        %s431 = scalar_select %p430, %s23, 3
        %p432 = scmp.lt.s32.totalorder %s429, 1
        %s433 = scalar_select %p432, %s429, 1
        %s434 = smul.addr %s431, 2
        %s435 = sadd.s32 %s433, %s434
        %s436 = smul.addr %s435, 4
        %s437 = scalar_lea.vmem %s2, %s436
      $region48: #{tpu_custom_call.1} parent=43 // pred_fallthru
        _
      // Predicated region
      $region49: #{tpu_custom_call.1} parent=43 // pred_check
        %p438 = pneg %p134
      $region50: #{tpu_custom_call.1} parent=43 // pred_check_branch
        %440 = sbr.rel (%p438) target = $region52
      $region51: #{tpu_custom_call.1} parent=43 // pred_region
        %s441 = smul.u32 2, %s22
        %p442 = scmp.lt.s32.totalorder %s23, 3
        %s443 = scalar_select %p442, %s23, 3
        %p444 = scmp.lt.s32.totalorder %s441, 1
        %s445 = scalar_select %p444, %s441, 1
        %s446 = smul.addr %s443, 2
        %s447 = sadd.s32 %s445, %s446
        %s448 = smul.addr %s447, 4
        %s449 = scalar_lea.vmem %s3, %s448
      $region52: #{tpu_custom_call.1} parent=43 // pred_fallthru
        _
      // Predicated region
      $region53: #{tpu_custom_call.1} parent=43 // pred_check
        %p450 = pneg %p162
      $region54: #{tpu_custom_call.1} parent=43 // pred_check_branch
        %452 = sbr.rel (%p450) target = $region56
      $region55: #{tpu_custom_call.1} parent=43 // pred_region
        %s453 = smul.u32 2, %s22
        %p454 = scmp.lt.s32.totalorder %s23, 3
        %s455 = scalar_select %p454, %s23, 3
        %p456 = scmp.lt.s32.totalorder %s453, 1
        %s457 = scalar_select %p456, %s453, 1
        %s458 = smul.addr %s455, 2
        %s459 = sadd.s32 %s457, %s458
        %s460 = smul.addr %s459, 4
        %s461 = scalar_lea.vmem %s4, %s460
      $region56: #{tpu_custom_call.1} parent=43 // pred_fallthru
        _
    $region44: #{tpu_custom_call.1} parent=5 // pred_fallthru
      _
  $region6: #{tpu_custom_call.1} parent=0 // loop_footer
    %s15 = sadd.s32 1, %s11
  $region7: #{tpu_custom_call.1} parent=0 // loop_footer_branch
    %10 = sbr.rel target = $region3
  $region8: #{tpu_custom_call.1} parent=0 // loop_exit
    _

</llo_original>
